<compile_context>
chip_gen: v7x
topology: tpu7x:2x2x1
jax: 0.10.0
libtpu: 0.0.40
codegen_flags: <defaults>
</compile_context>

<pallas_src>
import jax
import jax.numpy as jnp
from jax.experimental import pallas as pl
from jax.experimental.pallas import tpu as pltpu


def _critic_kernel(xT_ref, w1T_ref, b1_ref, w2_ref, b2_ref, o_ref):
    # xT_ref : (S, TB)   input block, batch on lanes
    # w1T_ref: (H, S)    fc1 weights (transposed), resident in VMEM
    # b1_ref : (H, 1)    fc1 bias as a column
    # w2_ref : (H, 1)    fc2 weights as a column
    # b2_ref : (1, 1)    fc2 bias, scalar in SMEM
    # o_ref  : (1, TB)   lane-dense output block
    w1T = w1T_ref[...]                                        # (H, S)
    S = w1T.shape[1]

    # fc1 on the VPU: K = S is tiny, so broadcast-multiply-add beats a
    # zero-padded MXU contraction. Static unroll over the S feature rows.
    acc = w1T[:, 0:1] * xT_ref[0:1, :]                        # (H, TB)
    for s in range(1, S):
        acc = acc + w1T[:, s:s + 1] * xT_ref[s:s + 1, :]
    hT = jnp.maximum(acc + b1_ref[...], 0.0)                  # ReLU, (H, TB)

    # fc2: elementwise scale + sublane (XLU) reduction; MXU stays idle.
    outT = jnp.sum(hT * w2_ref[...], axis=0, keepdims=True)   # (1, TB)
    o_ref[...] = outT + b2_ref[0, 0]


def critic_forward(x, w1, b1, w2, b2, *, block_b=2048):
    """Pallas forward pass matching the PyTorch Critic: relu(x@W1+b1)@W2+b2.

    x: (B, S) f32, w1: (S, H), b1: (1, H), w2: (H, 1), b2: (1, 1). Returns (B, 1).
    """
    B, S = x.shape
    H = w1.shape[1]

    # Layout plumbing in the wrapper: present batch on lanes to the kernel.
    xT = x.T                                                  # (S, B)
    w1T = w1.T                                                # (H, S)
    b1c = jnp.reshape(b1, (H, 1)).astype(jnp.float32)
    w2c = jnp.reshape(w2, (H, 1)).astype(jnp.float32)
    b2s = jnp.reshape(b2, (1, 1)).astype(jnp.float32)

    if B <= block_b:
        TB, Bp = B, B                  # single full-array block (no (8,128) issue)
    else:
        TB = block_b                   # multiple of 128 -> lane-aligned blocks
        Bp = pl.cdiv(B, TB) * TB
        if Bp != B:
            xT = jnp.pad(xT, ((0, 0), (0, Bp - B)))
    grid = (Bp // TB,)

    outT = pl.pallas_call(
        _critic_kernel,
        out_shape=jax.ShapeDtypeStruct((1, Bp), jnp.float32),
        grid=grid,
        in_specs=[
            pl.BlockSpec((S, TB), lambda i: (0, i)),          # xT: streamed per block
            pl.BlockSpec((H, S), lambda i: (0, 0)),           # w1T: DMA'd once, resident
            pl.BlockSpec((H, 1), lambda i: (0, 0)),           # b1
            pl.BlockSpec((H, 1), lambda i: (0, 0)),           # w2
            pl.BlockSpec((1, 1), lambda i: (0, 0),
                         memory_space=pltpu.MemorySpace.SMEM),  # b2 scalar in SMEM
        ],
        out_specs=pl.BlockSpec((1, TB), lambda i: (0, i)),    # lane-dense output
        compiler_params=pltpu.CompilerParams(
            dimension_semantics=("parallel",)),               # v7x: shard across 2 TCs
    )(xT, w1T, b1c, w2c, b2s)

    return outT[:, :B].T                                      # (B, 1), PyTorch layout


def init_critic_params(key, num_state, hidden=32):
    # Deterministic synthetic init (uniform +/- 1/sqrt(fan_in), like nn.Linear).
    k1, k2, k3, k4 = jax.random.split(key, 4)
    lim1 = 1.0 / jnp.sqrt(jnp.float32(num_state))
    lim2 = 1.0 / jnp.sqrt(jnp.float32(hidden))
    w1 = jax.random.uniform(k1, (num_state, hidden), jnp.float32, -lim1, lim1)
    b1 = jax.random.uniform(k2, (1, hidden), jnp.float32, -lim1, lim1)
    w2 = jax.random.uniform(k3, (hidden, 1), jnp.float32, -lim2, lim2)
    b2 = jax.random.uniform(k4, (1, 1), jnp.float32, -lim2, lim2)
    return w1, b1, w2, b2


def _reference(x, w1, b1, w2, b2):
    return jnp.maximum(x @ w1 + b1, 0.0) @ w2 + b2


if __name__ == "__main__":
    num_state = 2     # MountainCar observation dim
    key = jax.random.PRNGKey(0)
    kx, kp, kx2 = jax.random.split(key, 3)
    w1, b1, w2, b2 = init_critic_params(kp, num_state)

    # Small batch: single full-array block, grid = 1.
    x_small = jax.random.normal(kx, (8, num_state), jnp.float32)
    out_small = critic_forward(x_small, w1, b1, w2, b2)
    jax.block_until_ready(out_small)
    ref_small = _reference(x_small, w1, b1, w2, b2)
    assert out_small.shape == (8, 1)
    assert jnp.allclose(out_small, ref_small, atol=1e-5), "small-batch mismatch"

    # Larger batch exercising the batch grid (3 lane-aligned blocks of 1024,
    # including padding of the last block) — the amortized, realistic PPO path.
    x_big = jax.random.normal(kx2, (2560, num_state), jnp.float32)
    out_big = critic_forward(x_big, w1, b1, w2, b2, block_b=1024)
    jax.block_until_ready(out_big)
    ref_big = _reference(x_big, w1, b1, w2, b2)
    assert out_big.shape == (2560, 1)
    assert jnp.allclose(out_big, ref_big, atol=1e-5), "gridded-batch mismatch"

    print("KERNEL_OK")
</pallas_src>

<mosaic_0001>
module attributes {stable_mosaic.version = 11 : i64} {
  func.func @_critic_kernel(%arg0: i32, %arg1: memref<2x8xf32, #tpu.memory_space<vmem>>, %arg2: memref<32x2xf32, #tpu.memory_space<vmem>>, %arg3: memref<32x1xf32, #tpu.memory_space<vmem>>, %arg4: memref<32x1xf32, #tpu.memory_space<vmem>>, %arg5: memref<1x1xf32, #tpu.memory_space<smem>>, %arg6: memref<1x8xf32, #tpu.memory_space<vmem>>) attributes {dimension_semantics = [#tpu.dimension_semantics<parallel>], iteration_bounds = array<i64: 1>, scalar_prefetch = 0 : i64, scratch_operands = 0 : i64, tpu.core_type = #tpu.core_type<tc>, window_params = [{transform_indices = @transform_0, window_bounds = array<i64: 2, 8>}, {pipeline_mode = #tpu.pipeline_mode<synchronous>, transform_indices = @transform_1, window_bounds = array<i64: 32, 2>}, {pipeline_mode = #tpu.pipeline_mode<synchronous>, transform_indices = @transform_2, window_bounds = array<i64: 32, 1>}, {pipeline_mode = #tpu.pipeline_mode<synchronous>, transform_indices = @transform_3, window_bounds = array<i64: 32, 1>}, {transform_indices = @transform_4, window_bounds = array<i64: 1, 1>}, {transform_indices = @transform_5, window_bounds = array<i64: 1, 8>}]} {
    %c0 = arith.constant 0 : index
    %c0_0 = arith.constant 0 : index
    %0 = vector.load %arg2[%c0, %c0_0] : memref<32x2xf32, #tpu.memory_space<vmem>>, vector<32x2xf32>
    %1 = vector.extract_strided_slice %0 {offsets = [0, 0], sizes = [32, 1], strides = [1, 1]} : vector<32x2xf32> to vector<32x1xf32>
    %c0_1 = arith.constant 0 : index
    %c0_2 = arith.constant 0 : index
    %2 = vector.load %arg1[%c0_1, %c0_2] : memref<2x8xf32, #tpu.memory_space<vmem>>, vector<1x8xf32>
    %3 = vector.broadcast %1 : vector<32x1xf32> to vector<32x8xf32>
    %4 = vector.broadcast %2 : vector<1x8xf32> to vector<32x8xf32>
    %5 = arith.mulf %3, %4 : vector<32x8xf32>
    %6 = vector.extract_strided_slice %0 {offsets = [0, 1], sizes = [32, 1], strides = [1, 1]} : vector<32x2xf32> to vector<32x1xf32>
    %c1 = arith.constant 1 : index
    %c0_3 = arith.constant 0 : index
    %7 = vector.load %arg1[%c1, %c0_3] : memref<2x8xf32, #tpu.memory_space<vmem>>, vector<1x8xf32>
    %8 = vector.broadcast %6 : vector<32x1xf32> to vector<32x8xf32>
    %9 = vector.broadcast %7 : vector<1x8xf32> to vector<32x8xf32>
    %10 = arith.mulf %8, %9 : vector<32x8xf32>
    %11 = arith.addf %5, %10 : vector<32x8xf32>
    %c0_4 = arith.constant 0 : index
    %c0_5 = arith.constant 0 : index
    %12 = vector.load %arg3[%c0_4, %c0_5] : memref<32x1xf32, #tpu.memory_space<vmem>>, vector<32x1xf32>
    %13 = vector.broadcast %12 : vector<32x1xf32> to vector<32x8xf32>
    %14 = arith.addf %11, %13 : vector<32x8xf32>
    %cst = arith.constant 0.000000e+00 : f32
    %15 = vector.broadcast %cst : f32 to vector<32x8xf32>
    %16 = arith.maximumf %14, %15 : vector<32x8xf32>
    %c0_6 = arith.constant 0 : index
    %c0_7 = arith.constant 0 : index
    %17 = vector.load %arg4[%c0_6, %c0_7] : memref<32x1xf32, #tpu.memory_space<vmem>>, vector<32x1xf32>
    %18 = vector.broadcast %17 : vector<32x1xf32> to vector<32x8xf32>
    %19 = arith.mulf %16, %18 : vector<32x8xf32>
    %cst_8 = arith.constant dense<0.000000e+00> : vector<8xf32>
    %20 = vector.multi_reduction <add>, %19, %cst_8 [0] : vector<32x8xf32> to vector<8xf32>
    %21 = vector.shape_cast %20 : vector<8xf32> to vector<1x8xf32>
    %c0_9 = arith.constant 0 : index
    %c0_10 = arith.constant 0 : index
    %22 = memref.load %arg5[%c0_9, %c0_10] : memref<1x1xf32, #tpu.memory_space<smem>>
    %23 = vector.broadcast %22 : f32 to vector<1x8xf32>
    %24 = arith.addf %21, %23 : vector<1x8xf32>
    %c0_11 = arith.constant 0 : index
    %c0_12 = arith.constant 0 : index
    %25 = vector.load %arg6[%c0_11, %c0_12] : memref<1x8xf32, #tpu.memory_space<vmem>>, vector<1x8xf32>
    tpu.vector_store %arg6[%c0_11, %c0_12], %24 {strides = array<i32>} : memref<1x8xf32, #tpu.memory_space<vmem>>, vector<1x8xf32>,
    return
  }
  func.func @transform_0(%arg0: i32) -> (i32, i32) {
    %c0_i32 = arith.constant 0 : i32
    %c0_i32_0 = arith.constant 0 : i32
    return %c0_i32, %arg0 : i32, i32
  }
  func.func @transform_1(%arg0: i32) -> (i32, i32) {
    %c0_i32 = arith.constant 0 : i32
    %c0_i32_0 = arith.constant 0 : i32
    %c0_i32_1 = arith.constant 0 : i32
    return %c0_i32, %c0_i32_0 : i32, i32
  }
  func.func @transform_2(%arg0: i32) -> (i32, i32) {
    %c0_i32 = arith.constant 0 : i32
    %c0_i32_0 = arith.constant 0 : i32
    %c0_i32_1 = arith.constant 0 : i32
    return %c0_i32, %c0_i32_0 : i32, i32
  }
  func.func @transform_3(%arg0: i32) -> (i32, i32) {
    %c0_i32 = arith.constant 0 : i32
    %c0_i32_0 = arith.constant 0 : i32
    %c0_i32_1 = arith.constant 0 : i32
    return %c0_i32, %c0_i32_0 : i32, i32
  }
  func.func @transform_4(%arg0: i32) -> (i32, i32) {
    %c0_i32 = arith.constant 0 : i32
    %c0_i32_0 = arith.constant 0 : i32
    %c0_i32_1 = arith.constant 0 : i32
    return %c0_i32, %c0_i32_0 : i32, i32
  }
  func.func @transform_5(%arg0: i32) -> (i32, i32) {
    %c0_i32 = arith.constant 0 : i32
    %c0_i32_0 = arith.constant 0 : i32
    return %c0_i32, %arg0 : i32, i32
  }
}

</mosaic_0001>

<llo_original>
// kernel: tpu_custom_call.1
$region0: #{tpu_custom_call.1}
  #allocation0 [shape = 'u32[]', space=smem, size = 0x4, offset = 0x4, fixed_abs, tag = 'smem constant byte address 0x4 - core index']
  #allocation1 [shape = 'u32[144,128]{1,0:T(1,128)}', space=vmem, size = 0x12000, scoped, tag = 'internal scratch']
  #allocation2 [shape = 'f32[1,1]{1,0:T(1,128)S(6)}', space=smem, size = 0x200, scoped, tag = 'scoped memory for tpu_custom_call.1']
  %s0 = inlined_call_operand.vmem [shape: f32[2,8], index: 0, kind: input, shape index: {}]
  %s1 = inlined_call_operand.vmem [shape: f32[32,2], index: 1, kind: input, shape index: {}]
  %s2 = inlined_call_operand.vmem [shape: f32[32,1], index: 2, kind: input, shape index: {}]
  %s3 = inlined_call_operand.vmem [shape: f32[32,1], index: 3, kind: input, shape index: {}]
  %s4 = inlined_call_operand.<no memory space> [shape: f32[1,1], index: 4, kind: input, shape index: {}]
  %s5 = inlined_call_operand.hbm [shape: f32[1,8], index: 5, kind: output, shape index: {}]
  %s6 = sld [smem:[#allocation0]]
  $region30: #{tpu_custom_call.1} parent=0
    _
  %s8 = ssub.s32 1, %s6
  %s9 = scalar_select 0, %s8, %s6
  %10 = sst [smem:[#allocation2]] %s4
  $region1: #{tpu_custom_call.1} parent=0
    #allocation3 [shape = 'u8[512]{0}', space=vmem, size = 0x400, scoped, tag = 'output window, operand 0, single buffered']
    #allocation4 [shape = 's32[1]{0}', space=sflag, size = 0x4, scoped, tag = 'scoped memory for tpu_custom_call.1']
    %11 = vsyncpa [#allocation4], 0
    // Predicated region
    $region2: #{tpu_custom_call.1} parent=1 // pred_check
      _
    $region3: #{tpu_custom_call.1} parent=1 // pred_check_branch
      %13 = sbr.rel (0) target = $region5
    $region4: #{tpu_custom_call.1} parent=1 // pred_region
      _
    $region5: #{tpu_custom_call.1} parent=1 // pred_fallthru
      _
    // Predicated region
    $region6: #{tpu_custom_call.1} parent=1 // pred_check
      _
    $region7: #{tpu_custom_call.1} parent=1 // pred_check_branch
      %15 = sbr.rel (0) target = $region9
    $region8: #{tpu_custom_call.1} parent=1 // pred_region
      _
    $region9: #{tpu_custom_call.1} parent=1 // pred_fallthru
      _
    // Predicated region
    $region10: #{tpu_custom_call.1} parent=1 // pred_check
      _
    $region11: #{tpu_custom_call.1} parent=1 // pred_check_branch
      %17 = sbr.rel (0) target = $region13
    $region12: #{tpu_custom_call.1} parent=1 // pred_region
      _
    $region13: #{tpu_custom_call.1} parent=1 // pred_fallthru
      _
    // Predicated region
    $region14: #{tpu_custom_call.1} parent=1 // pred_check
      _
    $region15: #{tpu_custom_call.1} parent=1 // pred_check_branch
      %19 = sbr.rel (0) target = $region17
    $region16: #{tpu_custom_call.1} parent=1 // pred_region
      _
    $region17: #{tpu_custom_call.1} parent=1 // pred_fallthru
      _
    // Predicated region
    $region18: #{tpu_custom_call.1} parent=1 // pred_check
      _
    $region19: #{tpu_custom_call.1} parent=1 // pred_check_branch
      %21 = sbr.rel (0) target = $region21
    $region20: #{tpu_custom_call.1} parent=1 // pred_region
      _
    $region21: #{tpu_custom_call.1} parent=1 // pred_fallthru
      _
    %v22 = vld [vmem:[%s1] sm:$0xff]
    %v23 = vld [vmem:[%s1 + $0x8] sm:$0xff]
    %v24 = vld [vmem:[%s1 + $0x10] sm:$0xff]
    %v25 = vld [vmem:[%s1 + $0x18] sm:$0xff]
    %v26 = vld [vmem:[%s0] sm:$0x1]
    %28 = vset.pattern.permute.xlu0 0
    %29 = vperm.xlu0 %28, %v22
    %v30 = vpop.permute.xlu0 %29
    %33 = vset.pattern.permute.xlu0 0
    %34 = vperm.xlu0 %33, %v23
    %v35 = vpop.permute.xlu0 %34
    %38 = vset.pattern.permute.xlu0 0
    %39 = vperm.xlu0 %38, %v24
    %v40 = vpop.permute.xlu0 %39
    %43 = vset.pattern.permute.xlu0 0
    %44 = vperm.xlu0 %43, %v25
    %v45 = vpop.permute.xlu0 %44
    %v47 = vlaneseq
    %v48 = vshrl.u32 %v47, 7
    %v49 = vsub.s32 0, %v48
    %v50 = vrot.slane %v26, %v49
    %v51 = vmul.f32 %v30, %v50
    %v52 = vmul.f32 %v35, %v50
    %v53 = vmul.f32 %v40, %v50
    %v54 = vmul.f32 %v45, %v50
    %v55 = vld [vmem:[%s0 + $0x1] sm:$0x1]
    %56 = vset.pattern.permute.xlu0 1
    %57 = vperm.xlu0 %56, %v22
    %v58 = vpop.permute.xlu0 %57
    %60 = vset.pattern.permute.xlu0 1
    %61 = vperm.xlu0 %60, %v23
    %v62 = vpop.permute.xlu0 %61
    %64 = vset.pattern.permute.xlu0 1
    %65 = vperm.xlu0 %64, %v24
    %v66 = vpop.permute.xlu0 %65
    %68 = vset.pattern.permute.xlu0 1
    %69 = vperm.xlu0 %68, %v25
    %v70 = vpop.permute.xlu0 %69
    %v72 = vlaneseq
    %v73 = vshrl.u32 %v72, 7
    %v74 = vsub.s32 0, %v73
    %v75 = vrot.slane %v55, %v74
    %v76 = vmul.f32 %v58, %v75
    %v77 = vmul.f32 %v62, %v75
    %v78 = vmul.f32 %v66, %v75
    %v79 = vmul.f32 %v70, %v75
    %v80 = vadd.f32 %v51, %v76
    %v81 = vadd.f32 %v52, %v77
    %v82 = vadd.f32 %v53, %v78
    %v83 = vadd.f32 %v54, %v79
    %v84 = vld [vmem:[%s2] sm:$0xff]
    %v85 = vld [vmem:[%s2 + $0x8] sm:$0xff]
    %v86 = vld [vmem:[%s2 + $0x10] sm:$0xff]
    %v87 = vld [vmem:[%s2 + $0x18] sm:$0xff]
    %89 = vset.pattern.permute.xlu0 0
    %90 = vperm.xlu0 %89, %v84
    %v91 = vpop.permute.xlu0 %90
    %94 = vset.pattern.permute.xlu0 0
    %95 = vperm.xlu0 %94, %v85
    %v96 = vpop.permute.xlu0 %95
    %99 = vset.pattern.permute.xlu0 0
    %100 = vperm.xlu0 %99, %v86
    %v101 = vpop.permute.xlu0 %100
    %104 = vset.pattern.permute.xlu0 0
    %105 = vperm.xlu0 %104, %v87
    %v106 = vpop.permute.xlu0 %105
    %v108 = vadd.f32 %v80, %v91
    %v109 = vadd.f32 %v81, %v96
    %v110 = vadd.f32 %v82, %v101
    %v111 = vadd.f32 %v83, %v106
    %v112 = vmax.f32 %v108, 0.0
    %v113 = vmax.f32 %v109, 0.0
    %v114 = vmax.f32 %v110, 0.0
    %v115 = vmax.f32 %v111, 0.0
    %v116 = vld [vmem:[%s3] sm:$0xff]
    %v117 = vld [vmem:[%s3 + $0x8] sm:$0xff]
    %v118 = vld [vmem:[%s3 + $0x10] sm:$0xff]
    %v119 = vld [vmem:[%s3 + $0x18] sm:$0xff]
    %121 = vset.pattern.permute.xlu0 0
    %122 = vperm.xlu0 %121, %v116
    %v123 = vpop.permute.xlu0 %122
    %126 = vset.pattern.permute.xlu0 0
    %127 = vperm.xlu0 %126, %v117
    %v128 = vpop.permute.xlu0 %127
    %131 = vset.pattern.permute.xlu0 0
    %132 = vperm.xlu0 %131, %v118
    %v133 = vpop.permute.xlu0 %132
    %136 = vset.pattern.permute.xlu0 0
    %137 = vperm.xlu0 %136, %v119
    %v138 = vpop.permute.xlu0 %137
    %v140 = vmul.f32 %v112, %v123
    %v141 = vmul.f32 %v113, %v128
    %v142 = vmul.f32 %v114, %v133
    %v143 = vmul.f32 %v115, %v138
    %vm144 = vcmask 64512
    %v145 = vsel %vm144, %v140, 0.0
    %v146 = vsel %vm144, %v141, 0.0
    %v147 = vadd.f32 %v145, %v146
    %v148 = vsel %vm144, %v142, 0.0
    %v149 = vadd.f32 %v147, %v148
    %v150 = vsel %vm144, %v143, 0.0
    %v151 = vadd.f32 %v149, %v150
    %v152 = vrot.slane %v151, 4
    %v153 = vadd.f32 %v151, %v152
    %v154 = vrot.slane %v153, 2
    %v155 = vadd.f32 %v153, %v154
    %v156 = vrot.slane %v155, 1
    %v157 = vadd.f32 %v155, %v156
    %s158 = sld [smem:[#allocation2]]
    %v159 = vstv %s158
    %v160 = vadd.f32 %v157, %v159
    %vm161 = vcmask 57344
    %162 = vst.msk [vmem:[#allocation3] sm:$0x1] %vm161, %v160
    // Predicated region
    $region22: #{tpu_custom_call.1} parent=1 // pred_check
      _
    $region23: #{tpu_custom_call.1} parent=1 // pred_check_branch
      %164 = sbr.rel (0) target = $region25
    $region24: #{tpu_custom_call.1} parent=1 // pred_region
      %s166 = ssub.s32 16, 16
      %167 = vsyncadd [#allocation4], %s166
      %s169 = sshll.u32 [#allocation3], 4
      %s170 = int_to_ptr.vmem [resolvable:$true] %s169
      %172 = dma.vmem_to_hbm [thread:$0]  %s170, 16, %s5, [#allocation4]
    $region25: #{tpu_custom_call.1} parent=1 // pred_fallthru
      _
    // Predicated region
    $region26: #{tpu_custom_call.1} parent=1 // pred_check
      _
    $region27: #{tpu_custom_call.1} parent=1 // pred_check_branch
      %174 = sbr.rel (0) target = $region29
    $region28: #{tpu_custom_call.1} parent=1 // pred_region
      %175 = dma.done [#allocation4], 16
    $region29: #{tpu_custom_call.1} parent=1 // pred_fallthru
      _
    %176 = vsyncpa [#allocation4], 1

</llo_original>
